<compile_context>
chip_gen: v6e
topology: v6e:2x2x1
jax: 0.10.0
libtpu: 0.0.40
codegen_flags: <defaults>
</compile_context>

<pallas_src>
import functools

import jax
import jax.numpy as jnp
from jax.experimental import pallas as pl
from jax.experimental.pallas import tpu as pltpu


# ---------------------------------------------------------------------------
# Kernels
# ---------------------------------------------------------------------------
def _damping_kernel_3d(x_ref, damp_ref, o_ref):
    # x_ref   : (bb, d)     single input timestep (timestep dim squeezed)
    # damp_ref: (t, d)      fp32 cumulative damping factors (resident)
    # o_ref   : (bb, t, d)  lane-dense output tile
    x = x_ref[...].astype(jnp.float32)                       # (bb, d)
    damp = damp_ref[...]                                     # (t, d) fp32
    o_ref[...] = (x[:, None, :] * damp[None, :, :]).astype(o_ref.dtype)


def _damping_kernel_flat(x_ref, damp_ref, o_ref, *, t, d):
    # Flattened layout for d_model not aligned to 128 lanes / pred_len not
    # filling a sublane tile.  x_ref: (bb, d); damp_ref: (t, d) fp32;
    # o_ref: (bb, t*d).  t is small -> statically unrolled slice stores.
    x = x_ref[...].astype(jnp.float32)                       # (bb, d)
    for k in range(t):
        row = damp_ref[k:k + 1, :]                           # (1, d) fp32
        o_ref[:, k * d:(k + 1) * d] = (x * row).astype(o_ref.dtype)


# ---------------------------------------------------------------------------
# Wrapper
# ---------------------------------------------------------------------------
def _pick_bb(b, row_bytes, *, batch_multiple):
    """Largest batch tile that (a) fits a ~16 MiB output-tile budget,
    (b) leaves >= 2 grid steps when possible (v7x has 2 TensorCores), and
    (c) respects the (8, 128) block constraint of the flattened layout."""
    budget = 16 << 20                                        # per output buffer
    bb = min(b, max(1, budget // max(1, row_bytes)))
    if b >= 2 * max(1, batch_multiple):
        bb = min(bb, pl.cdiv(b, 2))                          # >= 2 grid steps
    if batch_multiple > 1 and bb < b:
        bb = (bb // batch_multiple) * batch_multiple
        if bb == 0:
            bb = b                                           # cannot tile legally
    return max(1, bb)


def damping_layer(x, damping_factor_param, *, pred_len, nhead):
    """x: (b, 1, d); damping_factor_param: (1, nhead). Returns (b, pred_len, d)."""
    b, one, d = x.shape
    assert one == 1, "DampingLayer expects a single input timestep (b, 1, d)"
    assert d % nhead == 0
    dh = d // nhead
    t = pred_len
    out_dtype = x.dtype
    itemsize = jnp.dtype(out_dtype).itemsize

    # ---- tiny parameter glue (t*d fp32 values), plain JAX --------------------
    # t*d is negligible next to the b*t*d output, so building the table here is
    # cheaper than adding scalar-prefetch machinery to construct it in-kernel.
    alpha = jax.nn.sigmoid(damping_factor_param).astype(jnp.float32)    # (1, nhead)
    powers = jnp.arange(1, t + 1, dtype=jnp.float32)[:, None]           # (t, 1)
    damp = jnp.cumsum(alpha ** powers, axis=0)                          # (t, nhead)
    damp_full = jnp.repeat(damp, dh, axis=1)                            # (t, d) fp32

    # ---- layout selection -----------------------------------------------------
    # Lane-dense 3D output needs d % 128 == 0 AND t filling the sublane tile of
    # the output dtype (8 rows f32, 16 bf16, 32 int8/fp8); otherwise flatten.
    sublane_rows = (8 * 4) // itemsize
    lane_dense_3d = (d % 128 == 0) and (t % sublane_rows == 0)

    row_bytes = t * d * itemsize
    bb = _pick_bb(b, row_bytes, batch_multiple=1 if lane_dense_3d else 8)
    nb = pl.cdiv(b, bb)

    # ---- explicit VMEM budget: 2x out tile + 2x x tile + damp (+ slack) ------
    vmem_need = (2 * bb * t * d * itemsize
                 + 2 * bb * max(d, 128) * 4
                 + 2 * t * d * 4
                 + (2 << 20))
    vmem_limit = int(min(max(vmem_need, 32 << 20), 100 << 20))

    compiler_params = pltpu.CompilerParams(
        dimension_semantics=("parallel",),
        vmem_limit_bytes=vmem_limit)
    cost = pl.CostEstimate(
        flops=int(b * t * d),
        transcendentals=0,
        bytes_accessed=int((b * t * d + b * d) * itemsize + t * d * 4))

    # x: size-1 timestep dim squeezed out of the kernel Ref (sublane-waste free).
    x_spec = pl.BlockSpec((bb, pl.Squeezed(), d), lambda i: (i, 0, 0))
    # damp: constant block index -> DMA'd once, stays resident in VMEM, fp32.
    damp_spec = pl.BlockSpec((t, d), lambda i: (0, 0))

    if lane_dense_3d:
        out = pl.pallas_call(
            _damping_kernel_3d,
            out_shape=jax.ShapeDtypeStruct((b, t, d), out_dtype),
            grid_spec=pltpu.PrefetchScalarGridSpec(
                num_scalar_prefetch=0,
                grid=(nb,),
                in_specs=[x_spec, damp_spec],
                out_specs=pl.BlockSpec((bb, t, d), lambda i: (i, 0, 0))),
            compiler_params=compiler_params,
            cost_estimate=cost,
        )(x, damp_full)
    else:
        out_flat = pl.pallas_call(
            functools.partial(_damping_kernel_flat, t=t, d=d),
            out_shape=jax.ShapeDtypeStruct((b, t * d), out_dtype),
            grid_spec=pltpu.PrefetchScalarGridSpec(
                num_scalar_prefetch=0,
                grid=(nb,),
                in_specs=[x_spec, damp_spec],
                out_specs=pl.BlockSpec((bb, t * d), lambda i: (i, 0))),
            compiler_params=compiler_params,
            cost_estimate=cost,
        )(x, damp_full)
        out = out_flat.reshape(b, t, d)   # metadata-only (row-major contiguous)

    # TODO(synk): nn.Dropout(p=0.1) is the identity in eval mode; training-mode
    # stochastic dropout would need pltpu.prng_seed/prng_random_bits in-kernel.
    return out


# ---------------------------------------------------------------------------
# Pure-JAX reference (mirrors the PyTorch forward in eval mode)
# ---------------------------------------------------------------------------
def _reference(x, damping_factor_param, *, pred_len, nhead):
    b, _, d = x.shape
    dh = d // nhead
    alpha = jax.nn.sigmoid(damping_factor_param).astype(jnp.float32)    # (1, nhead)
    powers = jnp.arange(1, pred_len + 1, dtype=jnp.float32)[:, None]    # (t, 1)
    damp = jnp.cumsum(alpha ** powers, axis=0)                          # (t, nhead)
    xr = jnp.broadcast_to(x.astype(jnp.float32), (b, pred_len, d))
    xr = xr.reshape(b, pred_len, nhead, dh)
    out = xr * damp[None, :, :, None]
    return out.reshape(b, pred_len, d).astype(x.dtype)


if __name__ == "__main__":
    key = jax.random.PRNGKey(0)
    k_x1, k_p1, k_x2, k_p2 = jax.random.split(key, 4)

    # Config 1: lane-dense 3D path. b=3 exercises the ragged final block
    # (bb=2 -> grid of 2 steps, last step covers 1 batch row).
    B1, T1, H1, D1 = 3, 8, 4, 128
    x1 = jax.random.normal(k_x1, (B1, 1, D1), dtype=jnp.float32)
    p1 = jax.random.normal(k_p1, (1, H1), dtype=jnp.float32)   # nn.Parameter(randn(1, nhead))
    fwd1 = jax.jit(functools.partial(damping_layer, pred_len=T1, nhead=H1))
    out1 = jax.block_until_ready(fwd1(x1, p1))
    ref1 = _reference(x1, p1, pred_len=T1, nhead=H1)
    assert out1.shape == (B1, T1, D1)
    assert jnp.allclose(out1, ref1, atol=1e-5, rtol=1e-5), "3D path mismatch"

    # Config 2: d_model not a multiple of 128 and pred_len not filling the f32
    # sublane tile -> flattened (b, t*d) lane-dense output path.
    B2, T2, H2, D2 = 2, 6, 3, 96
    x2 = jax.random.normal(k_x2, (B2, 1, D2), dtype=jnp.float32)
    p2 = jax.random.normal(k_p2, (1, H2), dtype=jnp.float32)
    fwd2 = jax.jit(functools.partial(damping_layer, pred_len=T2, nhead=H2))
    out2 = jax.block_until_ready(fwd2(x2, p2))
    ref2 = _reference(x2, p2, pred_len=T2, nhead=H2)
    assert out2.shape == (B2, T2, D2)
    assert jnp.allclose(out2, ref2, atol=1e-5, rtol=1e-5), "flat path mismatch"

    print("KERNEL_OK")
</pallas_src>

<mosaic_0001>
module attributes {stable_mosaic.version = 11 : i64} {
  func.func @_damping_kernel_3d(%arg0: i32, %arg1: memref<2x1x128xf32, #tpu.memory_space<vmem>>, %arg2: memref<8x128xf32, #tpu.memory_space<vmem>>, %arg3: memref<2x8x128xf32, #tpu.memory_space<vmem>>) attributes {dimension_semantics = [#tpu.dimension_semantics<parallel>], iteration_bounds = array<i64: 2>, scalar_prefetch = 0 : i64, scratch_operands = 0 : i64, tpu.core_type = #tpu.core_type<tc>, window_params = [{transform_indices = @transform_0, window_bounds = array<i64: 2, 1, 128>}, {pipeline_mode = #tpu.pipeline_mode<synchronous>, transform_indices = @transform_1, window_bounds = array<i64: 8, 128>}, {transform_indices = @transform_2, window_bounds = array<i64: 2, 8, 128>}]} {
    %c0 = arith.constant 0 : index
    %c0_0 = arith.constant 0 : index
    %c0_1 = arith.constant 0 : index
    %0 = vector.load %arg1[%c0, %c0_0, %c0_1] : memref<2x1x128xf32, #tpu.memory_space<vmem>>, vector<2x1x128xf32>
    %1 = vector.shape_cast %0 : vector<2x1x128xf32> to vector<2x128xf32>
    %c0_2 = arith.constant 0 : index
    %c0_3 = arith.constant 0 : index
    %2 = vector.load %arg2[%c0_2, %c0_3] : memref<8x128xf32, #tpu.memory_space<vmem>>, vector<8x128xf32>
    %3 = vector.shape_cast %1 : vector<2x128xf32> to vector<2x1x128xf32>
    %4 = vector.shape_cast %2 : vector<8x128xf32> to vector<1x8x128xf32>
    %5 = vector.broadcast %3 : vector<2x1x128xf32> to vector<2x8x128xf32>
    %6 = vector.broadcast %4 : vector<1x8x128xf32> to vector<2x8x128xf32>
    %7 = arith.mulf %5, %6 : vector<2x8x128xf32>
    %c0_4 = arith.constant 0 : index
    %c0_5 = arith.constant 0 : index
    %c0_6 = arith.constant 0 : index
    %8 = vector.load %arg3[%c0_4, %c0_5, %c0_6] : memref<2x8x128xf32, #tpu.memory_space<vmem>>, vector<2x8x128xf32>
    tpu.vector_store %arg3[%c0_4, %c0_5, %c0_6], %7 {strides = array<i32>} : memref<2x8x128xf32, #tpu.memory_space<vmem>>, vector<2x8x128xf32>,
    return
  }
  func.func @transform_0(%arg0: i32) -> (i32, i32, i32) {
    %c0_i32 = arith.constant 0 : i32
    %c0_i32_0 = arith.constant 0 : i32
    %c0_i32_1 = arith.constant 0 : i32
    return %arg0, %c0_i32, %c0_i32_0 : i32, i32, i32
  }
  func.func @transform_1(%arg0: i32) -> (i32, i32) {
    %c0_i32 = arith.constant 0 : i32
    %c0_i32_0 = arith.constant 0 : i32
    %c0_i32_1 = arith.constant 0 : i32
    return %c0_i32, %c0_i32_0 : i32, i32
  }
  func.func @transform_2(%arg0: i32) -> (i32, i32, i32) {
    %c0_i32 = arith.constant 0 : i32
    %c0_i32_0 = arith.constant 0 : i32
    %c0_i32_1 = arith.constant 0 : i32
    return %arg0, %c0_i32, %c0_i32_0 : i32, i32, i32
  }
}

</mosaic_0001>

<llo_original>
// kernel: damping_layer.1
$region0: #{damping_layer.1}
  #allocation0 [shape = 'u32[]', space=smem, size = 0x4, offset = 0x4, fixed_abs, tag = 'smem constant byte address 0x4 - core index']
  #allocation1 [shape = 'u32[144,128]{1,0:T(1,128)}', space=vmem, size = 0x12000, scoped, tag = 'internal scratch']
  %s0 = inlined_call_operand.vmem [shape: f32[3,1,128], index: 0, kind: input, shape index: {}]
  %s1 = inlined_call_operand.vmem [shape: f32[8,128], index: 1, kind: input, shape index: {}]
  %s2 = inlined_call_operand.hbm [shape: f32[3,8,128], index: 2, kind: output, shape index: {}]
  %s3 = sld [smem:[#allocation0]]
  $region41: #{damping_layer.1} parent=0
    _
  %s5 = ssub.s32 1, %s3
  %s6 = scalar_select 0, %s5, %s3
  $region1: #{damping_layer.1} parent=0
    #allocation2 [shape = 'u8[16384]{0}', space=vmem, size = 0x4000, scoped, tag = 'output window, operand 0']
    #allocation3 [shape = 's32[2]{0}', space=sflag, size = 0x8, scoped, tag = 'scoped memory for damping_layer.1']
    %7 = vsyncpa [#allocation3], 0
    %s8 = scalar_lea.sflag [#allocation3], 1
    %9 = vsyncpa %s8, 0
    loop: start=0, step=1, limit=4
    $region2: #{damping_layer.1} parent=1 // loop_pre_header
      _
    $region3: #{damping_layer.1} parent=1 // loop_header
      %s11 = sphi 0, %s15
      %p12 = scmp.ge.s32.totalorder %s11, 4
      %s21 = sphi 0, %s23
      %s24 = sphi 0, %s21
      %s25 = sphi 0, %s24
      %s41 = sphi 0, %s25
      %s45 = sphi 0, %s45
      %s47 = sphi 0, %s45
      %s48 = sphi 0, %s47
      %s62 = sphi 0, %s48
      %s68 = sphi 0, %s70
      %s71 = sphi 0, %s68
      %s72 = sphi 0, %s71
      %s88 = sphi 0, %s72
    $region4: #{damping_layer.1} parent=1 // loop_header_branch
      %14 = sbr.rel (%p12) target = $region8
    $region5: #{damping_layer.1} parent=1 // loop_body
      %s16 = ssub.s32 %s11, 1
      %s17 = ssub.s32 %s11, 2
      %s18 = sadd.s32 %s11, 1
      %s19 = ssub.s32 %s11, %s18
      %p20 = scmp.eq.s32.totalorder %s19, 0
      %s22 = sadd.s32 %s21, 1
      %s23 = scalar_select %p20, %s21, %s22
      %p26 = pneg %p20
      %p27 = scmp.eq.s32.totalorder %s11, 1
      %p28 = por %p26, %p27
      %p29 = scmp.ne.s32.totalorder %s21, %s24
      %p30 = scmp.eq.s32.totalorder %s11, 0
      %p31 = por %p29, %p30
      %p32 = scmp.ne.s32.totalorder %s21, %s24
      %p33 = scmp.eq.s32.totalorder %s16, 1
      %p34 = por %p32, %p33
      %p35 = scmp.ne.s32.totalorder %s24, %s25
      %p36 = scmp.eq.s32.totalorder %s16, 0
      %p37 = por %p35, %p36
      %p38 = scmp.ne.s32.totalorder %s24, %s25
      %p39 = scmp.eq.s32.totalorder %s17, 1
      %p40 = por %p38, %p39
      %p42 = scmp.ne.s32.totalorder %s25, %s41
      %p43 = scmp.eq.s32.totalorder %s17, 0
      %p44 = por %p42, %p43
      %s46 = sadd.s32 %s45, 1
      %p49 = scmp.eq.s32.totalorder %s11, 1
      %p50 = scmp.ne.s32.totalorder %s45, %s47
      %p51 = scmp.eq.s32.totalorder %s11, 0
      %p52 = por %p50, %p51
      %p53 = scmp.ne.s32.totalorder %s45, %s47
      %p54 = scmp.eq.s32.totalorder %s16, 1
      %p55 = por %p53, %p54
      %p56 = scmp.ne.s32.totalorder %s47, %s48
      %p57 = scmp.eq.s32.totalorder %s16, 0
      %p58 = por %p56, %p57
      %p59 = scmp.ne.s32.totalorder %s47, %s48
      %p60 = scmp.eq.s32.totalorder %s17, 1
      %p61 = por %p59, %p60
      %p63 = scmp.ne.s32.totalorder %s48, %s62
      %p64 = scmp.eq.s32.totalorder %s17, 0
      %p65 = por %p63, %p64
      %s66 = ssub.s32 %s11, %s18
      %p67 = scmp.eq.s32.totalorder %s66, 0
      %s69 = sadd.s32 %s68, 1
      %s70 = scalar_select %p67, %s68, %s69
      %p73 = pneg %p67
      %p74 = scmp.eq.s32.totalorder %s11, 1
      %p75 = por %p73, %p74
      %p76 = scmp.ne.s32.totalorder %s68, %s71
      %p77 = scmp.eq.s32.totalorder %s11, 0
      %p78 = por %p76, %p77
      %p79 = scmp.ne.s32.totalorder %s68, %s71
      %p80 = scmp.eq.s32.totalorder %s16, 1
      %p81 = por %p79, %p80
      %p82 = scmp.ne.s32.totalorder %s71, %s72
      %p83 = scmp.eq.s32.totalorder %s16, 0
      %p84 = por %p82, %p83
      %p85 = scmp.ne.s32.totalorder %s71, %s72
      %p86 = scmp.eq.s32.totalorder %s17, 1
      %p87 = por %p85, %p86
      %p89 = scmp.ne.s32.totalorder %s72, %s88
      %p90 = scmp.eq.s32.totalorder %s17, 0
      %p91 = por %p89, %p90
      %p92 = scmp.le.s32.totalorder 1, %s11
      %p93 = scmp.lt.s32.totalorder %s11, 3
      %p94 = pnand %p92, %p93
      %p95 = pneg %p94
      // Predicated region
      $region9: #{damping_layer.1} parent=5 // pred_check
        _
      $region10: #{damping_layer.1} parent=5 // pred_check_branch
        %97 = sbr.rel (%p94) target = $region12
      $region11: #{damping_layer.1} parent=5 // pred_region
        %s98 = ssub.s32 %s11, 1
        // Predicated region
        $region13: #{damping_layer.1} parent=11 // pred_check
          %p99 = pneg %p58
        $region14: #{damping_layer.1} parent=11 // pred_check_branch
          %101 = sbr.rel (%p99) target = $region16
        $region15: #{damping_layer.1} parent=11 // pred_region
          _
        $region16: #{damping_layer.1} parent=11 // pred_fallthru
          _
      $region12: #{damping_layer.1} parent=5 // pred_fallthru
        _
      %p102 = scmp.lt.s32.totalorder %s11, 2
      // Predicated region
      $region17: #{damping_layer.1} parent=5 // pred_check
        %p103 = pneg %p102
      $region18: #{damping_layer.1} parent=5 // pred_check_branch
        %105 = sbr.rel (%p103) target = $region20
      $region19: #{damping_layer.1} parent=5 // pred_region
        // Predicated region
        $region21: #{damping_layer.1} parent=19 // pred_check
          %p106 = pneg %p31
        $region22: #{damping_layer.1} parent=19 // pred_check_branch
          %108 = sbr.rel (%p106) target = $region24
        $region23: #{damping_layer.1} parent=19 // pred_region
          %s109 = smul.u32 2, %s11
          %s110 = ssub.s32 3, %s109
          %p111 = scmp.lt.s32.totalorder %s110, 2
          %s112 = scalar_select %p111, %s110, 2
          %s113 = smul.u32 16, %s112
          %p114 = scmp.lt.s32.totalorder %s109, 2
          %s115 = scalar_select %p114, %s109, 2
          %s116 = scalar_lea.vmem %s0, %s115
          %s117 = smul.u32 2, %s11
          %s118 = ssub.s32 3, %s117
          %p119 = scmp.lt.s32.totalorder %s118, 2
          %s120 = scalar_select %p119, %s118, 2
          %s121 = smul.u32 16, %s120
        $region24: #{damping_layer.1} parent=19 // pred_fallthru
          _
      $region20: #{damping_layer.1} parent=5 // pred_fallthru
        _
      %p122 = scmp.le.s32.totalorder 1, %s11
      %p123 = scmp.lt.s32.totalorder %s11, 3
      %p124 = pnand %p122, %p123
      %p125 = pneg %p124
      // Predicated region
      $region25: #{damping_layer.1} parent=5 // pred_check
        _
      $region26: #{damping_layer.1} parent=5 // pred_check_branch
        %127 = sbr.rel (%p124) target = $region28
      $region27: #{damping_layer.1} parent=5 // pred_region
        %s128 = ssub.s32 %s11, 1
        %s129 = smul.u32 2, %s16
        %s130 = ssub.s32 3, %s129
        %p131 = scmp.lt.s32.totalorder %s130, 2
        %s132 = scalar_select %p131, %s130, 2
        %s133 = smul.u32 16, %s132
        %p134 = scmp.lt.s32.totalorder %s129, 2
        %s135 = scalar_select %p134, %s129, 2
        %s136 = scalar_lea.vmem %s0, %s135
        %p137 = pneg %p37
        %p138 = pneg %p34
        %p139 = pneg %p58
        %p140 = pneg %p55
        %p141 = pneg %p84
        %p142 = pneg %p81
        %s143 = sand.u32 %s71, 1
        %s144 = scalar_lea.sflag [#allocation3], %s143
        %s145 = sand.u32 %s71, 1
        %s146 = smul.addr %s145, 16
        %s147 = scalar_lea.vmem [#allocation2], %s146
        %s148 = smul.u32 2, %s16
        %s149 = ssub.s32 3, %s148
        %p150 = scmp.lt.s32.totalorder %s149, 2
        %s151 = scalar_select %p150, %s149, 2
        %s152 = smul.u32 16, %s151
        %p153 = scmp.lt.s32.totalorder %s148, 2
        %s154 = scalar_select %p153, %s148, 2
        %s155 = scalar_lea.vmem %s0, %s154
        %s156 = smul.u32 2, %s16
        %s157 = ssub.s32 3, %s156
        %p158 = scmp.lt.s32.totalorder %s157, 2
        %s159 = scalar_select %p158, %s157, 2
        %s160 = smul.u32 16, %s159
        %s161 = smul.u32 2, %s16
        %s162 = ssub.s32 3, %s161
        %p163 = scmp.lt.s32.totalorder %s162, 2
        %s164 = scalar_select %p163, %s162, 2
        %s165 = smul.u32 128, %s164
        %v166 = vld [vmem:[%s155] sm:$0x1]
        %v167 = vld [vmem:[%s155 + $0x1] sm:$0x1]
        %v168 = vld [vmem:[%s1] sm:$0xff]
        %v171 = vlaneseq
        %v172 = vshrl.u32 %v171, 7
        %v173 = vsub.s32 0, %v172
        %v174 = vrot.slane %v166, %v173
        %v175 = vlaneseq
        %v176 = vshrl.u32 %v175, 7
        %v177 = vsub.s32 0, %v176
        %v178 = vrot.slane %v167, %v177
        %v181 = vmul.f32 %v174, %v168
        %v182 = vmul.f32 %v178, %v168
        %183 = vst [vmem:[%s147] sm:$0xff] %v181
        %184 = vst [vmem:[%s147 + $0x8] sm:$0xff] %v182
        %s185 = sand.u32 %s71, 1
        %s186 = scalar_lea.sflag [#allocation3], %s185
        %s187 = sand.u32 %s71, 1
        %s188 = smul.addr %s187, 16
        %s189 = scalar_lea.vmem [#allocation2], %s188
        // Predicated region
        $region29: #{damping_layer.1} parent=27 // pred_check
          %p190 = pneg %p81
        $region30: #{damping_layer.1} parent=27 // pred_check_branch
          %192 = sbr.rel (%p190) target = $region32
        $region31: #{damping_layer.1} parent=27 // pred_region
          %s193 = smul.u32 2, %s16
          %s194 = ssub.s32 3, %s193
          %p195 = scmp.lt.s32.totalorder %s194, 2
          %s196 = scalar_select %p195, %s194, 2
          %s197 = smul.u32 128, %s196
          %s199 = ssub.s32 256, %s197
          %200 = vsyncadd %s186, %s199
          %p201 = scmp.ne.s32.totalorder 0, %s197
          %s202 = smul.addr %s193, 128
          %s203 = scalar_lea.hbm %s2, %s202
          %s204 = smul.u32 8, %s196
          %s205 = sshll.u32 %s189, 4
          %s206 = int_to_ptr.vmem [resolvable:$true] %s205
          %s207 = sshll.u32 %s204, 4
          %211 = dma.vmem_to_hbm [thread:$0]  (%p201), %s206, %s207, %s203, %s186, 128, 128, 8
        $region32: #{damping_layer.1} parent=27 // pred_fallthru
          _
      $region28: #{damping_layer.1} parent=5 // pred_fallthru
        _
      %p212 = scmp.le.s32.totalorder 2, %s11
      // Predicated region
      $region33: #{damping_layer.1} parent=5 // pred_check
        %p213 = pneg %p212
      $region34: #{damping_layer.1} parent=5 // pred_check_branch
        %215 = sbr.rel (%p213) target = $region36
      $region35: #{damping_layer.1} parent=5 // pred_region
        %s216 = ssub.s32 %s11, 2
        // Predicated region
        $region37: #{damping_layer.1} parent=35 // pred_check
          %p217 = pneg %p87
        $region38: #{damping_layer.1} parent=35 // pred_check_branch
          %219 = sbr.rel (%p217) target = $region40
        $region39: #{damping_layer.1} parent=35 // pred_region
          %s220 = sand.u32 %s72, 1
          %s221 = scalar_lea.sflag [#allocation3], %s220
          %s222 = sand.u32 %s72, 1
          %s223 = smul.addr %s222, 16
          %s224 = scalar_lea.vmem [#allocation2], %s223
          %225 = dma.done %s221, 256
        $region40: #{damping_layer.1} parent=35 // pred_fallthru
          _
      $region36: #{damping_layer.1} parent=5 // pred_fallthru
        _
    $region6: #{damping_layer.1} parent=1 // loop_footer
      %s15 = sadd.s32 1, %s11
    $region7: #{damping_layer.1} parent=1 // loop_footer_branch
      %10 = sbr.rel target = $region3
    $region8: #{damping_layer.1} parent=1 // loop_exit
      _
    %226 = vsyncpa [#allocation3], 1
    %s227 = scalar_lea.sflag [#allocation3], 1
    %228 = vsyncpa %s227, 1

</llo_original>
